<compile_context>
chip_gen: v5e
topology: v5e:2x2
jax: 0.10.0
libtpu: 0.0.40
codegen_flags: <defaults>
</compile_context>

<pallas_src>
import functools

import jax
import jax.numpy as jnp
from jax.experimental import pallas as pl
from jax.experimental.pallas import tpu as pltpu


_VMEM_LIMIT = 32 * 1024 * 1024  # explicit scoped-VMEM request, safe on v5e/v6e/v7x


def _round_up(x, m):
    return (x + m - 1) // m * m


def _choose_row_tile(n_rows, stream_bytes_per_row, budget_bytes=8 * 1024 * 1024,
                     max_tile=512):
    """Row tile (multiple of 8 sublanes): double-buffered streams <= budget."""
    full = _round_up(max(int(n_rows), 1), 8)
    cap = (budget_bytes // max(1, 2 * int(stream_bytes_per_row))) // 8 * 8
    cap = max(8, min(cap, max_tile))
    return full if full <= cap else cap


# ----------------------------------------------------------------------------
# Pallas kernels
# ----------------------------------------------------------------------------
def _agg_kernel(self_ref, nv_ref, rel_ref, user_ref, w_ref, b_ref, out_ref,
                *, n_neighbor, dim, act):
    """Embedding path for one row tile of one batch element.

    self_ref: (TR, D) f32      nv_ref/rel_ref: (TR, K*D) bf16 (lane-dense)
    user_ref: (1, D) f32       w_ref: (D, D) f32    b_ref: (1, D) f32
    out_ref : (TR, D) f32
    """
    K, D = n_neighbor, dim
    user = user_ref[...]                                             # (1, D)
    # user-relation score (mean over D), built column-by-column so the live set
    # stays at (TR, D)/(TR, K) tiles instead of a (TR, K, D) f32 temporary.
    cols = []
    for k in range(K):
        rel_k = rel_ref[:, k * D:(k + 1) * D].astype(jnp.float32)    # (TR, D)
        cols.append(jnp.sum(rel_k * user, axis=-1, keepdims=True))
    scores = jnp.concatenate(cols, axis=-1) * (1.0 / D)              # (TR, K)
    # softmax over neighbors (exp + approx reciprocal both go to the EUP)
    scores = scores - jnp.max(scores, axis=-1, keepdims=True)
    e = jnp.exp(scores)
    w = e * pl.reciprocal(jnp.sum(e, axis=-1, keepdims=True), approx=True)
    # weighted mean over neighbors, accumulated over K
    agg = w[:, 0:1] * nv_ref[:, 0:D].astype(jnp.float32)
    for k in range(1, K):
        agg = agg + w[:, k:k + 1] * nv_ref[:, k * D:(k + 1) * D].astype(jnp.float32)
    # GCN ('sum') combiner: act(Linear(self + mean_K(w * neighbors)))
    h = self_ref[...] + agg * (1.0 / K)
    h = jnp.dot(h, w_ref[...], preferred_element_type=jnp.float32) + b_ref[...]
    h = jnp.tanh(h) if act == "tanh" else jnp.maximum(h, 0.0)
    out_ref[...] = h.astype(out_ref.dtype)


def _label_kernel(self_ref, lbl_ref, rel_ref, user_ref, mask_ref, out_ref,
                  *, n_neighbor, dim):
    """Label-smoothness path for one row tile of one batch element.

    self_ref/mask_ref/out_ref: (TR, 1) f32   lbl_ref: (TR, K) f32
    rel_ref: (TR, K*D) bf16                  user_ref: (1, D) f32
    """
    K, D = n_neighbor, dim
    user = user_ref[...]
    cols = []
    for k in range(K):
        rel_k = rel_ref[:, k * D:(k + 1) * D].astype(jnp.float32)
        cols.append(jnp.sum(rel_k * user, axis=-1, keepdims=True))
    scores = jnp.concatenate(cols, axis=-1) * (1.0 / D)              # (TR, K)
    scores = scores - jnp.max(scores, axis=-1, keepdims=True)
    e = jnp.exp(scores)
    w = e * pl.reciprocal(jnp.sum(e, axis=-1, keepdims=True), approx=True)
    agg = jnp.sum(w * lbl_ref[...], axis=-1, keepdims=True) * (1.0 / K)  # (TR, 1)
    m = mask_ref[...]
    out_ref[...] = m * self_ref[...] + (1.0 - m) * agg


# ----------------------------------------------------------------------------
# pallas_call wrappers (one call per *iteration*, all hops fused)
# ----------------------------------------------------------------------------
def _aggregate_iteration(self_vec, nv, rel, user_emb, W, b, act):
    """self_vec: (B, M, D) f32; nv/rel: (B, M, K*D); user_emb: (B, D)."""
    B, M, D = self_vec.shape
    KD = nv.shape[-1]
    K = KD // D
    tr = _choose_row_tile(M, 2 * KD * 2)                 # nv + rel in bf16
    m_pad = _round_up(M, tr)
    pad = m_pad - M
    if pad:
        self_vec = jnp.pad(self_vec, ((0, 0), (0, pad), (0, 0)))
        nv = jnp.pad(nv, ((0, 0), (0, pad), (0, 0)))
        rel = jnp.pad(rel, ((0, 0), (0, pad), (0, 0)))
    nv_b = nv.astype(jnp.bfloat16)
    rel_b = rel.astype(jnp.bfloat16)
    user3 = user_emb.reshape(B, 1, D).astype(jnp.float32)
    w2 = W.astype(jnp.float32)
    b2 = b.reshape(1, D).astype(jnp.float32)

    kernel = functools.partial(_agg_kernel, n_neighbor=K, dim=D, act=act)
    out = pl.pallas_call(
        kernel,
        out_shape=jax.ShapeDtypeStruct((B, m_pad, D), jnp.float32),
        grid=(B, m_pad // tr),
        in_specs=[
            pl.BlockSpec((None, tr, D), lambda bi, ri: (bi, ri, 0)),
            pl.BlockSpec((None, tr, KD), lambda bi, ri: (bi, ri, 0)),
            pl.BlockSpec((None, tr, KD), lambda bi, ri: (bi, ri, 0)),
            pl.BlockSpec((None, 1, D), lambda bi, ri: (bi, 0, 0)),
            pl.BlockSpec((D, D), lambda bi, ri: (0, 0)),
            pl.BlockSpec((1, D), lambda bi, ri: (0, 0)),
        ],
        out_specs=pl.BlockSpec((None, tr, D), lambda bi, ri: (bi, ri, 0)),
        compiler_params=pltpu.CompilerParams(
            dimension_semantics=("parallel", "parallel"),
            vmem_limit_bytes=_VMEM_LIMIT),
    )(self_vec.astype(jnp.float32), nv_b, rel_b, user3, w2, b2)
    return out[:, :M, :]


def _label_iteration(self_labels, neigh_labels, rel, user_emb, masks):
    """self_labels/masks: (B, M); neigh_labels: (B, M, K); rel: (B, M, K*D)."""
    B, M = self_labels.shape
    K = neigh_labels.shape[-1]
    KD = rel.shape[-1]
    D = KD // K
    tr = _choose_row_tile(M, KD * 2 + K * 4)
    m_pad = _round_up(M, tr)
    pad = m_pad - M
    if pad:
        self_labels = jnp.pad(self_labels, ((0, 0), (0, pad)))
        masks = jnp.pad(masks, ((0, 0), (0, pad)))
        neigh_labels = jnp.pad(neigh_labels, ((0, 0), (0, pad), (0, 0)))
        rel = jnp.pad(rel, ((0, 0), (0, pad), (0, 0)))
    self3 = self_labels.reshape(B, m_pad, 1).astype(jnp.float32)
    mask3 = masks.reshape(B, m_pad, 1).astype(jnp.float32)
    lbl3 = neigh_labels.astype(jnp.float32)
    rel_b = rel.astype(jnp.bfloat16)
    user3 = user_emb.reshape(B, 1, D).astype(jnp.float32)

    kernel = functools.partial(_label_kernel, n_neighbor=K, dim=D)
    out = pl.pallas_call(
        kernel,
        out_shape=jax.ShapeDtypeStruct((B, m_pad, 1), jnp.float32),
        grid=(B, m_pad // tr),
        in_specs=[
            pl.BlockSpec((None, tr, 1), lambda bi, ri: (bi, ri, 0)),
            pl.BlockSpec((None, tr, K), lambda bi, ri: (bi, ri, 0)),
            pl.BlockSpec((None, tr, KD), lambda bi, ri: (bi, ri, 0)),
            pl.BlockSpec((None, 1, D), lambda bi, ri: (bi, 0, 0)),
            pl.BlockSpec((None, tr, 1), lambda bi, ri: (bi, ri, 0)),
        ],
        out_specs=pl.BlockSpec((None, tr, 1), lambda bi, ri: (bi, ri, 0)),
        compiler_params=pltpu.CompilerParams(
            dimension_semantics=("parallel", "parallel"),
            vmem_limit_bytes=_VMEM_LIMIT),
    )(self3, lbl3, rel_b, user3, mask3)
    return out[:, :M, 0]


# ----------------------------------------------------------------------------
# Module-level forward (mirrors KGNNLSConv.forward, hops fused per iteration)
# ----------------------------------------------------------------------------
def kgnnls_conv_forward(entity_vectors, relation_vectors, user_embeddings,
                        weights, biases, *, n_iter, n_neighbor, dim,
                        reset_masks=None):
    K, D = n_neighbor, dim
    B = entity_vectors[0].shape[0]
    label_path = reset_masks is not None

    # Rows per hop and prefix sums ("tree layout": hop0 rows, hop1 rows, ...).
    if label_path:
        m_hop = [int(ev.size) // B for ev in entity_vectors]
    else:
        m_hop = [int(ev.size) // (B * D) for ev in entity_vectors]
    S = [0]
    for m in m_hop:
        S.append(S[-1] + m)
    m0 = m_hop[0]

    # One-time flatten of the per-hop lists. In the original model these come
    # from a single embedding lookup of a (B, S)-shaped id tensor, so this
    # concat is layout-only. Relations are cast to bf16 once and re-sliced.
    if label_path:
        ent = jnp.concatenate(
            [entity_vectors[h].reshape(B, m_hop[h]).astype(jnp.float32)
             for h in range(n_iter + 1)], axis=1)
        msk = jnp.concatenate(
            [reset_masks[h].reshape(B, m_hop[h]).astype(jnp.float32)
             for h in range(n_iter)], axis=1)
    else:
        ent = jnp.concatenate(
            [entity_vectors[h].reshape(B, m_hop[h], D).astype(jnp.float32)
             for h in range(n_iter + 1)], axis=1)
    rel = jnp.concatenate(
        [relation_vectors[h].reshape(B, m_hop[h], K * D)
         for h in range(n_iter)], axis=1).astype(jnp.bfloat16)

    ent_cur = ent
    for i in range(n_iter):
        n_hops = n_iter - i
        rows = S[n_hops]                      # self rows = hops 0 .. n_hops-1
        rel_i = rel[:, :rows, :]
        if label_path:
            self_i = ent_cur[:, :rows]
            lbl_i = ent_cur[:, m0:m0 + K * rows].reshape(B, rows, K)
            ent_cur = _label_iteration(self_i, lbl_i, rel_i, user_embeddings,
                                       msk[:, :rows])
        else:
            self_i = ent_cur[:, :rows, :]
            nv_i = ent_cur[:, m0:m0 + K * rows, :].reshape(B, rows, K * D)
            act = "tanh" if i == n_iter - 1 else "relu"
            ent_cur = _aggregate_iteration(self_i, nv_i, rel_i, user_embeddings,
                                           weights[i], biases[i], act)

    if label_path:
        return jnp.squeeze(ent_cur, -1) if ent_cur.shape[-1] == 1 else ent_cur
    return ent_cur.reshape(-1, D)


# ----------------------------------------------------------------------------
# Pure-JAX reference (per-hop loop, same bf16 casts as the kernel path)
# ----------------------------------------------------------------------------
def _ref_forward(entity_vectors, relation_vectors, user_emb, Ws, bs,
                 n_iter, K, dim, reset_masks=None):
    def cast(x):
        return x.astype(jnp.bfloat16).astype(jnp.float32)

    def mix(nv, rel, user):
        user = user.reshape(-1, 1, 1, dim)
        score = jnp.mean(rel * user, axis=-1)
        score = jax.nn.softmax(score, axis=-1)[..., None]
        return jnp.mean(score * nv, axis=-2)

    ev = [jnp.asarray(e, jnp.float32) for e in entity_vectors]
    for i in range(n_iter):
        nxt = []
        for hop in range(n_iter - i):
            B = ev[hop].shape[0]
            rel = cast(relation_vectors[hop].reshape(B, -1, K, dim))
            if reset_masks is None:
                nv = cast(ev[hop + 1].reshape(B, -1, K, dim))
                agg = mix(nv, rel, user_emb)
                h = ev[hop].reshape(B, -1, dim) + agg
                h = h @ Ws[i] + bs[i]
                h = jnp.tanh(h) if i == n_iter - 1 else jax.nn.relu(h)
            else:
                nv = ev[hop + 1].reshape(B, -1, K, 1)
                agg = jnp.squeeze(mix(nv, rel, user_emb), -1)
                m = reset_masks[hop].reshape(B, -1).astype(jnp.float32)
                h = m * ev[hop].reshape(B, -1) + (1.0 - m) * agg
            nxt.append(h)
        ev = nxt
    if reset_masks is None:
        return ev[0].reshape(-1, dim)
    return jnp.squeeze(ev[0], -1)


# ----------------------------------------------------------------------------
if __name__ == "__main__":
    key = jax.random.PRNGKey(0)
    B, D, K, n_iter = 2, 32, 4, 2

    ks = jax.random.split(key, 16)
    entity_vectors = [
        jax.random.normal(ks[0], (B, 1, D), jnp.float32),
        jax.random.normal(ks[1], (B, K, D), jnp.float32),
        jax.random.normal(ks[2], (B, K * K, D), jnp.float32),
    ]
    relation_vectors = [
        jax.random.normal(ks[3], (B, K, D), jnp.float32),
        jax.random.normal(ks[4], (B, K * K, D), jnp.float32),
    ]
    user_embeddings = jax.random.normal(ks[5], (B, D), jnp.float32)

    weights = [0.1 * jax.random.normal(ks[6 + i], (D, D), jnp.float32)
               for i in range(n_iter)]
    biases = [0.01 * jax.random.normal(ks[8 + i], (D,), jnp.float32)
              for i in range(n_iter)]

    entity_labels = [
        jax.random.uniform(ks[10], (B, 1), jnp.float32),
        jax.random.uniform(ks[11], (B, K), jnp.float32),
        jax.random.uniform(ks[12], (B, K * K), jnp.float32),
    ]
    reset_masks = [
        jax.random.bernoulli(ks[13], 0.5, (B, 1)),
        jax.random.bernoulli(ks[14], 0.5, (B, K)),
    ]

    # --- embedding-aggregation path (reset_masks=None) ---
    out_emb = kgnnls_conv_forward(entity_vectors, relation_vectors,
                                  user_embeddings, weights, biases,
                                  n_iter=n_iter, n_neighbor=K, dim=D)
    out_emb = jax.block_until_ready(out_emb)
    ref_emb = _ref_forward(entity_vectors, relation_vectors, user_embeddings,
                           weights, biases, n_iter, K, D)
    assert out_emb.shape == (B, D)
    assert jnp.allclose(out_emb, ref_emb, atol=2e-2, rtol=2e-2)

    # --- label-smoothness path (reset_masks given) ---
    out_lbl = kgnnls_conv_forward(entity_labels, relation_vectors,
                                  user_embeddings, weights, biases,
                                  n_iter=n_iter, n_neighbor=K, dim=D,
                                  reset_masks=reset_masks)
    out_lbl = jax.block_until_ready(out_lbl)
    ref_lbl = _ref_forward(entity_labels, relation_vectors, user_embeddings,
                           weights, biases, n_iter, K, D,
                           reset_masks=reset_masks)
    assert out_lbl.shape == (B,)
    assert jnp.allclose(out_lbl, ref_lbl, atol=2e-2, rtol=2e-2)

    print("KERNEL_OK")
</pallas_src>

<mosaic_0001>
module attributes {stable_mosaic.version = 11 : i64} {
  func.func @_agg_kernel(%arg0: i32, %arg1: i32, %arg2: memref<1x8x32xf32, #tpu.memory_space<vmem>>, %arg3: memref<1x8x128xbf16, #tpu.memory_space<vmem>>, %arg4: memref<1x8x128xbf16, #tpu.memory_space<vmem>>, %arg5: memref<1x1x32xf32, #tpu.memory_space<vmem>>, %arg6: memref<32x32xf32, #tpu.memory_space<vmem>>, %arg7: memref<1x32xf32, #tpu.memory_space<vmem>>, %arg8: memref<1x8x32xf32, #tpu.memory_space<vmem>>) attributes {dimension_semantics = [#tpu.dimension_semantics<parallel>, #tpu.dimension_semantics<parallel>], iteration_bounds = array<i64: 2, 1>, scalar_prefetch = 0 : i64, scratch_operands = 0 : i64, tpu.core_type = #tpu.core_type<tc>, window_params = [{transform_indices = @transform_0, window_bounds = array<i64: 1, 8, 32>}, {transform_indices = @transform_1, window_bounds = array<i64: 1, 8, 128>}, {transform_indices = @transform_2, window_bounds = array<i64: 1, 8, 128>}, {transform_indices = @transform_3, window_bounds = array<i64: 1, 1, 32>}, {pipeline_mode = #tpu.pipeline_mode<synchronous>, transform_indices = @transform_4, window_bounds = array<i64: 32, 32>}, {pipeline_mode = #tpu.pipeline_mode<synchronous>, transform_indices = @transform_5, window_bounds = array<i64: 1, 32>}, {transform_indices = @transform_6, window_bounds = array<i64: 1, 8, 32>}]} {
    %c0 = arith.constant 0 : index
    %c0_0 = arith.constant 0 : index
    %c0_1 = arith.constant 0 : index
    %0 = vector.load %arg5[%c0, %c0_0, %c0_1] : memref<1x1x32xf32, #tpu.memory_space<vmem>>, vector<1x1x32xf32>
    %1 = vector.shape_cast %0 : vector<1x1x32xf32> to vector<1x32xf32>
    %c0_2 = arith.constant 0 : index
    %c0_3 = arith.constant 0 : index
    %c0_4 = arith.constant 0 : index
    %2 = vector.load %arg4[%c0_2, %c0_3, %c0_4] : memref<1x8x128xbf16, #tpu.memory_space<vmem>>, vector<1x8x32xbf16>
    %3 = vector.shape_cast %2 : vector<1x8x32xbf16> to vector<8x32xbf16>
    %4 = arith.extf %3 : vector<8x32xbf16> to vector<8x32xf32>
    %5 = vector.broadcast %1 : vector<1x32xf32> to vector<8x32xf32>
    %6 = arith.mulf %4, %5 : vector<8x32xf32>
    %cst = arith.constant dense<0.000000e+00> : vector<8xf32>
    %7 = vector.multi_reduction <add>, %6, %cst [1] : vector<8x32xf32> to vector<8xf32>
    %8 = vector.shape_cast %7 : vector<8xf32> to vector<8x1xf32>
    %c0_5 = arith.constant 0 : index
    %c0_6 = arith.constant 0 : index
    %c32 = arith.constant 32 : index
    %9 = vector.load %arg4[%c0_5, %c0_6, %c32] : memref<1x8x128xbf16, #tpu.memory_space<vmem>>, vector<1x8x32xbf16>
    %10 = vector.shape_cast %9 : vector<1x8x32xbf16> to vector<8x32xbf16>
    %11 = arith.extf %10 : vector<8x32xbf16> to vector<8x32xf32>
    %12 = vector.broadcast %1 : vector<1x32xf32> to vector<8x32xf32>
    %13 = arith.mulf %11, %12 : vector<8x32xf32>
    %cst_7 = arith.constant dense<0.000000e+00> : vector<8xf32>
    %14 = vector.multi_reduction <add>, %13, %cst_7 [1] : vector<8x32xf32> to vector<8xf32>
    %15 = vector.shape_cast %14 : vector<8xf32> to vector<8x1xf32>
    %c0_8 = arith.constant 0 : index
    %c0_9 = arith.constant 0 : index
    %c64 = arith.constant 64 : index
    %16 = vector.load %arg4[%c0_8, %c0_9, %c64] : memref<1x8x128xbf16, #tpu.memory_space<vmem>>, vector<1x8x32xbf16>
    %17 = vector.shape_cast %16 : vector<1x8x32xbf16> to vector<8x32xbf16>
    %18 = arith.extf %17 : vector<8x32xbf16> to vector<8x32xf32>
    %19 = vector.broadcast %1 : vector<1x32xf32> to vector<8x32xf32>
    %20 = arith.mulf %18, %19 : vector<8x32xf32>
    %cst_10 = arith.constant dense<0.000000e+00> : vector<8xf32>
    %21 = vector.multi_reduction <add>, %20, %cst_10 [1] : vector<8x32xf32> to vector<8xf32>
    %22 = vector.shape_cast %21 : vector<8xf32> to vector<8x1xf32>
    %c0_11 = arith.constant 0 : index
    %c0_12 = arith.constant 0 : index
    %c96 = arith.constant 96 : index
    %23 = vector.load %arg4[%c0_11, %c0_12, %c96] : memref<1x8x128xbf16, #tpu.memory_space<vmem>>, vector<1x8x32xbf16>
    %24 = vector.shape_cast %23 : vector<1x8x32xbf16> to vector<8x32xbf16>
    %25 = arith.extf %24 : vector<8x32xbf16> to vector<8x32xf32>
    %26 = vector.broadcast %1 : vector<1x32xf32> to vector<8x32xf32>
    %27 = arith.mulf %25, %26 : vector<8x32xf32>
    %cst_13 = arith.constant dense<0.000000e+00> : vector<8xf32>
    %28 = vector.multi_reduction <add>, %27, %cst_13 [1] : vector<8x32xf32> to vector<8xf32>
    %29 = vector.shape_cast %28 : vector<8xf32> to vector<8x1xf32>
    %30 = tpu.concatenate %8, %15, %22, %29 in 1 : vector<8x1xf32>, vector<8x1xf32>, vector<8x1xf32>, vector<8x1xf32> -> vector<8x4xf32>
    %cst_14 = arith.constant 3.125000e-02 : f32
    %31 = vector.broadcast %cst_14 : f32 to vector<8x4xf32>
    %32 = arith.mulf %30, %31 : vector<8x4xf32>
    %cst_15 = arith.constant dense<0xFF800000> : vector<8xf32>
    %33 = vector.multi_reduction <maximumf>, %32, %cst_15 [1] : vector<8x4xf32> to vector<8xf32>
    %34 = vector.shape_cast %33 : vector<8xf32> to vector<8x1xf32>
    %35 = vector.broadcast %34 : vector<8x1xf32> to vector<8x4xf32>
    %36 = arith.subf %32, %35 : vector<8x4xf32>
    %37 = math.exp %36 : vector<8x4xf32>
    %cst_16 = arith.constant dense<0.000000e+00> : vector<8xf32>
    %38 = vector.multi_reduction <add>, %37, %cst_16 [1] : vector<8x4xf32> to vector<8xf32>
    %39 = vector.shape_cast %38 : vector<8xf32> to vector<8x1xf32>
    %40 = tpu.reciprocal %39 {approx = true} : vector<8x1xf32> -> vector<8x1xf32>
    %41 = vector.broadcast %40 : vector<8x1xf32> to vector<8x4xf32>
    %42 = arith.mulf %37, %41 : vector<8x4xf32>
    %43 = vector.extract_strided_slice %42 {offsets = [0, 0], sizes = [8, 1], strides = [1, 1]} : vector<8x4xf32> to vector<8x1xf32>
    %c0_17 = arith.constant 0 : index
    %c0_18 = arith.constant 0 : index
    %c0_19 = arith.constant 0 : index
    %44 = vector.load %arg3[%c0_17, %c0_18, %c0_19] : memref<1x8x128xbf16, #tpu.memory_space<vmem>>, vector<1x8x32xbf16>
    %45 = vector.shape_cast %44 : vector<1x8x32xbf16> to vector<8x32xbf16>
    %46 = arith.extf %45 : vector<8x32xbf16> to vector<8x32xf32>
    %47 = vector.broadcast %43 : vector<8x1xf32> to vector<8x32xf32>
    %48 = arith.mulf %47, %46 : vector<8x32xf32>
    %49 = vector.extract_strided_slice %42 {offsets = [0, 1], sizes = [8, 1], strides = [1, 1]} : vector<8x4xf32> to vector<8x1xf32>
    %c0_20 = arith.constant 0 : index
    %c0_21 = arith.constant 0 : index
    %c32_22 = arith.constant 32 : index
    %50 = vector.load %arg3[%c0_20, %c0_21, %c32_22] : memref<1x8x128xbf16, #tpu.memory_space<vmem>>, vector<1x8x32xbf16>
    %51 = vector.shape_cast %50 : vector<1x8x32xbf16> to vector<8x32xbf16>
    %52 = arith.extf %51 : vector<8x32xbf16> to vector<8x32xf32>
    %53 = vector.broadcast %49 : vector<8x1xf32> to vector<8x32xf32>
    %54 = arith.mulf %53, %52 : vector<8x32xf32>
    %55 = arith.addf %48, %54 : vector<8x32xf32>
    %56 = vector.extract_strided_slice %42 {offsets = [0, 2], sizes = [8, 1], strides = [1, 1]} : vector<8x4xf32> to vector<8x1xf32>
    %c0_23 = arith.constant 0 : index
    %c0_24 = arith.constant 0 : index
    %c64_25 = arith.constant 64 : index
    %57 = vector.load %arg3[%c0_23, %c0_24, %c64_25] : memref<1x8x128xbf16, #tpu.memory_space<vmem>>, vector<1x8x32xbf16>
    %58 = vector.shape_cast %57 : vector<1x8x32xbf16> to vector<8x32xbf16>
    %59 = arith.extf %58 : vector<8x32xbf16> to vector<8x32xf32>
    %60 = vector.broadcast %56 : vector<8x1xf32> to vector<8x32xf32>
    %61 = arith.mulf %60, %59 : vector<8x32xf32>
    %62 = arith.addf %55, %61 : vector<8x32xf32>
    %63 = vector.extract_strided_slice %42 {offsets = [0, 3], sizes = [8, 1], strides = [1, 1]} : vector<8x4xf32> to vector<8x1xf32>
    %c0_26 = arith.constant 0 : index
    %c0_27 = arith.constant 0 : index
    %c96_28 = arith.constant 96 : index
    %64 = vector.load %arg3[%c0_26, %c0_27, %c96_28] : memref<1x8x128xbf16, #tpu.memory_space<vmem>>, vector<1x8x32xbf16>
    %65 = vector.shape_cast %64 : vector<1x8x32xbf16> to vector<8x32xbf16>
    %66 = arith.extf %65 : vector<8x32xbf16> to vector<8x32xf32>
    %67 = vector.broadcast %63 : vector<8x1xf32> to vector<8x32xf32>
    %68 = arith.mulf %67, %66 : vector<8x32xf32>
    %69 = arith.addf %62, %68 : vector<8x32xf32>
    %c0_29 = arith.constant 0 : index
    %c0_30 = arith.constant 0 : index
    %c0_31 = arith.constant 0 : index
    %70 = vector.load %arg2[%c0_29, %c0_30, %c0_31] : memref<1x8x32xf32, #tpu.memory_space<vmem>>, vector<1x8x32xf32>
    %71 = vector.shape_cast %70 : vector<1x8x32xf32> to vector<8x32xf32>
    %cst_32 = arith.constant 2.500000e-01 : f32
    %72 = vector.broadcast %cst_32 : f32 to vector<8x32xf32>
    %73 = arith.mulf %69, %72 : vector<8x32xf32>
    %74 = arith.addf %71, %73 : vector<8x32xf32>
    %c0_33 = arith.constant 0 : index
    %c0_34 = arith.constant 0 : index
    %75 = vector.load %arg6[%c0_33, %c0_34] : memref<32x32xf32, #tpu.memory_space<vmem>>, vector<32x32xf32>
    %cst_35 = arith.constant dense<0.000000e+00> : vector<8x32xf32>
    %76 = tpu.matmul %74, %75, %cst_35 {dimension_numbers = #tpu.dot_dimension_numbers<[1], [0], [0], [1], [0, 0, 1, 1], [], []>} : vector<8x32xf32>, vector<32x32xf32>, vector<8x32xf32> -> vector<8x32xf32>
    %c0_36 = arith.constant 0 : index
    %c0_37 = arith.constant 0 : index
    %77 = vector.load %arg7[%c0_36, %c0_37] : memref<1x32xf32, #tpu.memory_space<vmem>>, vector<1x32xf32>
    %78 = vector.broadcast %77 : vector<1x32xf32> to vector<8x32xf32>
    %79 = arith.addf %76, %78 : vector<8x32xf32>
    %cst_38 = arith.constant 0.000000e+00 : f32
    %80 = vector.broadcast %cst_38 : f32 to vector<8x32xf32>
    %81 = arith.maximumf %79, %80 : vector<8x32xf32>
    %c0_39 = arith.constant 0 : index
    %c0_40 = arith.constant 0 : index
    %c0_41 = arith.constant 0 : index
    %82 = vector.load %arg8[%c0_39, %c0_40, %c0_41] : memref<1x8x32xf32, #tpu.memory_space<vmem>>, vector<1x8x32xf32>
    %83 = vector.shape_cast %82 : vector<1x8x32xf32> to vector<8x32xf32>
    %84 = vector.shape_cast %81 : vector<8x32xf32> to vector<1x8x32xf32>
    tpu.vector_store %arg8[%c0_39, %c0_40, %c0_41], %84 {strides = array<i32>} : memref<1x8x32xf32, #tpu.memory_space<vmem>>, vector<1x8x32xf32>,
    return
  }
  func.func @transform_0(%arg0: i32, %arg1: i32) -> (i32, i32, i32) {
    %c0_i32 = arith.constant 0 : i32
    %c0_i32_0 = arith.constant 0 : i32
    return %arg0, %arg1, %c0_i32 : i32, i32, i32
  }
  func.func @transform_1(%arg0: i32, %arg1: i32) -> (i32, i32, i32) {
    %c0_i32 = arith.constant 0 : i32
    %c0_i32_0 = arith.constant 0 : i32
    return %arg0, %arg1, %c0_i32 : i32, i32, i32
  }
  func.func @transform_2(%arg0: i32, %arg1: i32) -> (i32, i32, i32) {
    %c0_i32 = arith.constant 0 : i32
    %c0_i32_0 = arith.constant 0 : i32
    return %arg0, %arg1, %c0_i32 : i32, i32, i32
  }
  func.func @transform_3(%arg0: i32, %arg1: i32) -> (i32, i32, i32) {
    %c0_i32 = arith.constant 0 : i32
    %c0_i32_0 = arith.constant 0 : i32
    %c0_i32_1 = arith.constant 0 : i32
    return %arg0, %c0_i32, %c0_i32_0 : i32, i32, i32
  }
  func.func @transform_4(%arg0: i32, %arg1: i32) -> (i32, i32) {
    %c0_i32 = arith.constant 0 : i32
    %c0_i32_0 = arith.constant 0 : i32
    %c0_i32_1 = arith.constant 0 : i32
    return %c0_i32, %c0_i32_0 : i32, i32
  }
  func.func @transform_5(%arg0: i32, %arg1: i32) -> (i32, i32) {
    %c0_i32 = arith.constant 0 : i32
    %c0_i32_0 = arith.constant 0 : i32
    %c0_i32_1 = arith.constant 0 : i32
    return %c0_i32, %c0_i32_0 : i32, i32
  }
  func.func @transform_6(%arg0: i32, %arg1: i32) -> (i32, i32, i32) {
    %c0_i32 = arith.constant 0 : i32
    %c0_i32_0 = arith.constant 0 : i32
    return %arg0, %arg1, %c0_i32 : i32, i32, i32
  }
}

</mosaic_0001>

<llo_original>
// kernel: tpu_custom_call.1
$region0: #{tpu_custom_call.1}
  #allocation0 [shape = 'u32[]', space=smem, size = 0x4, offset = 0x4, fixed_abs, tag = 'smem constant byte address 0x4 - core index']
  #allocation1 [shape = 'u32[72,128]{1,0:T(1,128)}', space=vmem, size = 0x9000, scoped, tag = 'internal scratch']
  %s0 = inlined_call_operand.hbm [shape: f32[2,8,32], index: 0, kind: input, shape index: {}]
  %s1 = inlined_call_operand.hbm [shape: bf16[2,8,128], index: 1, kind: input, shape index: {}]
  %s2 = inlined_call_operand.hbm [shape: bf16[2,8,128], index: 2, kind: input, shape index: {}]
  %s3 = inlined_call_operand.vmem [shape: f32[2,1,32], index: 3, kind: input, shape index: {}]
  %s4 = inlined_call_operand.hbm [shape: f32[32,32], index: 4, kind: input, shape index: {}]
  %s5 = inlined_call_operand.vmem [shape: f32[1,32], index: 5, kind: input, shape index: {}]
  %s6 = inlined_call_operand.hbm [shape: f32[2,8,32], index: 6, kind: output, shape index: {}]
  %s7 = sld [smem:[#allocation0]]
  $region73: #{tpu_custom_call.1} parent=0
    _
  %s9 = ssub.s32 1, %s7
  %s10 = scalar_select 0, %s9, %s7
  $region1: #{tpu_custom_call.1} parent=0
    #allocation2 [shape = 'u8[8192]{0}', space=vmem, size = 0x2000, scoped, tag = 'input window, operand 0']
    #allocation3 [shape = 's32[2]{0}', space=sflag, size = 0x8, scoped, tag = 'scoped memory for tpu_custom_call.1']
    #allocation4 [shape = 's32[2]{0}', space=sflag, size = 0x8, scoped, tag = 'scoped memory for tpu_custom_call.1']
    #allocation5 [shape = 'u8[4096]{0}', space=vmem, size = 0x1000, scoped, tag = 'input window, operand 1']
    #allocation6 [shape = 's32[2]{0}', space=sflag, size = 0x8, scoped, tag = 'scoped memory for tpu_custom_call.1']
    #allocation7 [shape = 'u8[4096]{0}', space=vmem, size = 0x1000, scoped, tag = 'input window, operand 2']
    #allocation8 [shape = 'u8[16384]{0}', space=vmem, size = 0x4000, scoped, tag = 'input window, operand 4, single buffered']
    #allocation9 [shape = 's32[1]{0}', space=sflag, size = 0x4, scoped, tag = 'scoped memory for tpu_custom_call.1']
    #allocation10 [shape = 'u8[8192]{0}', space=vmem, size = 0x2000, scoped, tag = 'output window, operand 0']
    %11 = vsyncpa [#allocation3], 0
    %s12 = scalar_lea.sflag [#allocation3], 1
    %13 = vsyncpa %s12, 0
    %14 = vsyncpa [#allocation6], 0
    %s15 = scalar_lea.sflag [#allocation6], 1
    %16 = vsyncpa %s15, 0
    %17 = vsyncpa [#allocation9], 0
    %18 = vsyncpa [#allocation4], 0
    %s19 = scalar_lea.sflag [#allocation4], 1
    %20 = vsyncpa %s19, 0
    loop: start=0, step=1, limit=4
    $region2: #{tpu_custom_call.1} parent=1 // loop_pre_header
      _
    $region3: #{tpu_custom_call.1} parent=1 // loop_header
      %s22 = sphi 0, %s26
      %p23 = scmp.ge.s32.totalorder %s22, 4
      %s29 = sphi 0, %s41
      %s30 = sphi 0, %s37
      %s31 = sphi 0, %s29
      %s32 = sphi 0, %s30
      %s33 = sphi 0, %s31
      %s34 = sphi 0, %s32
      %s46 = sphi 0, %s48
      %s49 = sphi 0, %s46
      %s50 = sphi 0, %s49
      %s66 = sphi 0, %s50
      %s74 = sphi 0, %s76
      %s77 = sphi 0, %s74
      %s78 = sphi 0, %s77
      %s94 = sphi 0, %s78
      %s102 = sphi 0, %s104
      %s105 = sphi 0, %s102
      %s106 = sphi 0, %s105
      %s122 = sphi 0, %s106
      %s128 = sphi 0, %s130
      %s131 = sphi 0, %s128
      %s132 = sphi 0, %s131
      %s148 = sphi 0, %s132
      %s152 = sphi 0, %s152
      %s154 = sphi 0, %s152
      %s155 = sphi 0, %s154
      %s169 = sphi 0, %s155
      %s173 = sphi 0, %s173
      %s175 = sphi 0, %s173
      %s176 = sphi 0, %s175
      %s190 = sphi 0, %s176
      %s198 = sphi 0, %s200
      %s201 = sphi 0, %s198
      %s202 = sphi 0, %s201
      %s218 = sphi 0, %s202
    $region4: #{tpu_custom_call.1} parent=1 // loop_header_branch
      %25 = sbr.rel (%p23) target = $region8
    $region5: #{tpu_custom_call.1} parent=1 // loop_body
      %s27 = ssub.s32 %s22, 1
      %s28 = ssub.s32 %s22, 2
      %s35 = sadd.s32 1, %s30
      %p36 = scmp.ge.s32.totalorder %s35, 1
      %s37 = scalar_select %p36, 0, %s35
      %s38 = sadd.s32 1, %s29
      %s39 = scalar_select %p36, %s38, %s29
      %p40 = scmp.ge.s32.totalorder %s39, 2
      %s41 = scalar_select %p40, 0, %s39
      %s42 = ssub.s32 %s29, %s41
      %s43 = ssub.s32 %s30, %s37
      %s44 = sor.u32 %s42, %s43
      %p45 = scmp.eq.s32.totalorder %s44, 0
      %s47 = sadd.s32 %s46, 1
      %s48 = scalar_select %p45, %s46, %s47
      %p51 = pneg %p45
      %p52 = scmp.eq.s32.totalorder %s22, 1
      %p53 = por %p51, %p52
      %p54 = scmp.ne.s32.totalorder %s46, %s49
      %p55 = scmp.eq.s32.totalorder %s22, 0
      %p56 = por %p54, %p55
      %p57 = scmp.ne.s32.totalorder %s46, %s49
      %p58 = scmp.eq.s32.totalorder %s27, 1
      %p59 = por %p57, %p58
      %p60 = scmp.ne.s32.totalorder %s49, %s50
      %p61 = scmp.eq.s32.totalorder %s27, 0
      %p62 = por %p60, %p61
      %p63 = scmp.ne.s32.totalorder %s49, %s50
      %p64 = scmp.eq.s32.totalorder %s28, 1
      %p65 = por %p63, %p64
      %p67 = scmp.ne.s32.totalorder %s50, %s66
      %p68 = scmp.eq.s32.totalorder %s28, 0
      %p69 = por %p67, %p68
      %s70 = ssub.s32 %s29, %s41
      %s71 = ssub.s32 %s30, %s37
      %s72 = sor.u32 %s70, %s71
      %p73 = scmp.eq.s32.totalorder %s72, 0
      %s75 = sadd.s32 %s74, 1
      %s76 = scalar_select %p73, %s74, %s75
      %p79 = pneg %p73
      %p80 = scmp.eq.s32.totalorder %s22, 1
      %p81 = por %p79, %p80
      %p82 = scmp.ne.s32.totalorder %s74, %s77
      %p83 = scmp.eq.s32.totalorder %s22, 0
      %p84 = por %p82, %p83
      %p85 = scmp.ne.s32.totalorder %s74, %s77
      %p86 = scmp.eq.s32.totalorder %s27, 1
      %p87 = por %p85, %p86
      %p88 = scmp.ne.s32.totalorder %s77, %s78
      %p89 = scmp.eq.s32.totalorder %s27, 0
      %p90 = por %p88, %p89
      %p91 = scmp.ne.s32.totalorder %s77, %s78
      %p92 = scmp.eq.s32.totalorder %s28, 1
      %p93 = por %p91, %p92
      %p95 = scmp.ne.s32.totalorder %s78, %s94
      %p96 = scmp.eq.s32.totalorder %s28, 0
      %p97 = por %p95, %p96
      %s98 = ssub.s32 %s29, %s41
      %s99 = ssub.s32 %s30, %s37
      %s100 = sor.u32 %s98, %s99
      %p101 = scmp.eq.s32.totalorder %s100, 0
      %s103 = sadd.s32 %s102, 1
      %s104 = scalar_select %p101, %s102, %s103
      %p107 = pneg %p101
      %p108 = scmp.eq.s32.totalorder %s22, 1
      %p109 = por %p107, %p108
      %p110 = scmp.ne.s32.totalorder %s102, %s105
      %p111 = scmp.eq.s32.totalorder %s22, 0
      %p112 = por %p110, %p111
      %p113 = scmp.ne.s32.totalorder %s102, %s105
      %p114 = scmp.eq.s32.totalorder %s27, 1
      %p115 = por %p113, %p114
      %p116 = scmp.ne.s32.totalorder %s105, %s106
      %p117 = scmp.eq.s32.totalorder %s27, 0
      %p118 = por %p116, %p117
      %p119 = scmp.ne.s32.totalorder %s105, %s106
      %p120 = scmp.eq.s32.totalorder %s28, 1
      %p121 = por %p119, %p120
      %p123 = scmp.ne.s32.totalorder %s106, %s122
      %p124 = scmp.eq.s32.totalorder %s28, 0
      %p125 = por %p123, %p124
      %s126 = ssub.s32 %s29, %s41
      %p127 = scmp.eq.s32.totalorder %s126, 0
      %s129 = sadd.s32 %s128, 1
      %s130 = scalar_select %p127, %s128, %s129
      %p133 = pneg %p127
      %p134 = scmp.eq.s32.totalorder %s22, 1
      %p135 = por %p133, %p134
      %p136 = scmp.ne.s32.totalorder %s128, %s131
      %p137 = scmp.eq.s32.totalorder %s22, 0
      %p138 = por %p136, %p137
      %p139 = scmp.ne.s32.totalorder %s128, %s131
      %p140 = scmp.eq.s32.totalorder %s27, 1
      %p141 = por %p139, %p140
      %p142 = scmp.ne.s32.totalorder %s131, %s132
      %p143 = scmp.eq.s32.totalorder %s27, 0
      %p144 = por %p142, %p143
      %p145 = scmp.ne.s32.totalorder %s131, %s132
      %p146 = scmp.eq.s32.totalorder %s28, 1
      %p147 = por %p145, %p146
      %p149 = scmp.ne.s32.totalorder %s132, %s148
      %p150 = scmp.eq.s32.totalorder %s28, 0
      %p151 = por %p149, %p150
      %s153 = sadd.s32 %s152, 1
      %p156 = scmp.eq.s32.totalorder %s22, 1
      %p157 = scmp.ne.s32.totalorder %s152, %s154
      %p158 = scmp.eq.s32.totalorder %s22, 0
      %p159 = por %p157, %p158
      %p160 = scmp.ne.s32.totalorder %s152, %s154
      %p161 = scmp.eq.s32.totalorder %s27, 1
      %p162 = por %p160, %p161
      %p163 = scmp.ne.s32.totalorder %s154, %s155
      %p164 = scmp.eq.s32.totalorder %s27, 0
      %p165 = por %p163, %p164
      %p166 = scmp.ne.s32.totalorder %s154, %s155
      %p167 = scmp.eq.s32.totalorder %s28, 1
      %p168 = por %p166, %p167
      %p170 = scmp.ne.s32.totalorder %s155, %s169
      %p171 = scmp.eq.s32.totalorder %s28, 0
      %p172 = por %p170, %p171
      %s174 = sadd.s32 %s173, 1
      %p177 = scmp.eq.s32.totalorder %s22, 1
      %p178 = scmp.ne.s32.totalorder %s173, %s175
      %p179 = scmp.eq.s32.totalorder %s22, 0
      %p180 = por %p178, %p179
      %p181 = scmp.ne.s32.totalorder %s173, %s175
      %p182 = scmp.eq.s32.totalorder %s27, 1
      %p183 = por %p181, %p182
      %p184 = scmp.ne.s32.totalorder %s175, %s176
      %p185 = scmp.eq.s32.totalorder %s27, 0
      %p186 = por %p184, %p185
      %p187 = scmp.ne.s32.totalorder %s175, %s176
      %p188 = scmp.eq.s32.totalorder %s28, 1
      %p189 = por %p187, %p188
      %p191 = scmp.ne.s32.totalorder %s176, %s190
      %p192 = scmp.eq.s32.totalorder %s28, 0
      %p193 = por %p191, %p192
      %s194 = ssub.s32 %s29, %s41
      %s195 = ssub.s32 %s30, %s37
      %s196 = sor.u32 %s194, %s195
      %p197 = scmp.eq.s32.totalorder %s196, 0
      %s199 = sadd.s32 %s198, 1
      %s200 = scalar_select %p197, %s198, %s199
      %p203 = pneg %p197
      %p204 = scmp.eq.s32.totalorder %s22, 1
      %p205 = por %p203, %p204
      %p206 = scmp.ne.s32.totalorder %s198, %s201
      %p207 = scmp.eq.s32.totalorder %s22, 0
      %p208 = por %p206, %p207
      %p209 = scmp.ne.s32.totalorder %s198, %s201
      %p210 = scmp.eq.s32.totalorder %s27, 1
      %p211 = por %p209, %p210
      %p212 = scmp.ne.s32.totalorder %s201, %s202
      %p213 = scmp.eq.s32.totalorder %s27, 0
      %p214 = por %p212, %p213
      %p215 = scmp.ne.s32.totalorder %s201, %s202
      %p216 = scmp.eq.s32.totalorder %s28, 1
      %p217 = por %p215, %p216
      %p219 = scmp.ne.s32.totalorder %s202, %s218
      %p220 = scmp.eq.s32.totalorder %s28, 0
      %p221 = por %p219, %p220
      %p222 = scmp.le.s32.totalorder 1, %s22
      %p223 = scmp.lt.s32.totalorder %s22, 3
      %p224 = pnand %p222, %p223
      %p225 = pneg %p224
      // Predicated region
      $region9: #{tpu_custom_call.1} parent=5 // pred_check
        _
      $region10: #{tpu_custom_call.1} parent=5 // pred_check_branch
        %227 = sbr.rel (%p224) target = $region12
      $region11: #{tpu_custom_call.1} parent=5 // pred_region
        %s228 = ssub.s32 %s22, 1
        // Predicated region
        $region13: #{tpu_custom_call.1} parent=11 // pred_check
          %p229 = pneg %p165
        $region14: #{tpu_custom_call.1} parent=11 // pred_check_branch
          %231 = sbr.rel (%p229) target = $region16
        $region15: #{tpu_custom_call.1} parent=11 // pred_region
          %233 = vsyncadd [#allocation9], 0
          %s234 = sshll.u32 %s4, 4
          %s235 = int_to_ptr.hbm [resolvable:$true] %s234
          %s236 = sshll.u32 [#allocation8], 4
          %s237 = int_to_ptr.vmem [resolvable:$true] %s236
          %242 = dma.hbm_to_vmem [thread:$0]  %s235, 512, %s237, [#allocation9], 128, 128, 8
        $region16: #{tpu_custom_call.1} parent=11 // pred_fallthru
          _
        // Predicated region
        $region17: #{tpu_custom_call.1} parent=11 // pred_check
          %p243 = pneg %p186
        $region18: #{tpu_custom_call.1} parent=11 // pred_check_branch
          %245 = sbr.rel (%p243) target = $region20
        $region19: #{tpu_custom_call.1} parent=11 // pred_region
          _
        $region20: #{tpu_custom_call.1} parent=11 // pred_fallthru
          _
      $region12: #{tpu_custom_call.1} parent=5 // pred_fallthru
        _
      %p246 = scmp.lt.s32.totalorder %s22, 2
      // Predicated region
      $region21: #{tpu_custom_call.1} parent=5 // pred_check
        %p247 = pneg %p246
      $region22: #{tpu_custom_call.1} parent=5 // pred_check_branch
        %249 = sbr.rel (%p247) target = $region24
      $region23: #{tpu_custom_call.1} parent=5 // pred_region
        // Predicated region
        $region25: #{tpu_custom_call.1} parent=23 // pred_check
          %p250 = pneg %p56
        $region26: #{tpu_custom_call.1} parent=23 // pred_check_branch
          %252 = sbr.rel (%p250) target = $region28
        $region27: #{tpu_custom_call.1} parent=23 // pred_region
          %s253 = sand.u32 %s46, 1
          %s254 = scalar_lea.sflag [#allocation3], %s253
          %s255 = sand.u32 %s46, 1
          %s256 = smul.addr %s255, 8
          %s257 = scalar_lea.vmem [#allocation2], %s256
          %259 = vsyncadd %s254, 0
          %s260 = sadd.s32 %s30, %s29
          %s261 = smul.addr %s260, 8
          %s262 = scalar_lea.hbm %s0, %s261
          %s264 = sshll.u32 %s262, 4
          %s265 = int_to_ptr.hbm [resolvable:$true] %s264
          %s266 = sshll.u32 %s257, 4
          %s267 = int_to_ptr.vmem [resolvable:$true] %s266
          %269 = dma.hbm_to_vmem [thread:$0]  %s265, 128, %s267, %s254
        $region28: #{tpu_custom_call.1} parent=23 // pred_fallthru
          _
        // Predicated region
        $region29: #{tpu_custom_call.1} parent=23 // pred_check
          %p270 = pneg %p84
        $region30: #{tpu_custom_call.1} parent=23 // pred_check_branch
          %272 = sbr.rel (%p270) target = $region32
        $region31: #{tpu_custom_call.1} parent=23 // pred_region
          %s273 = sand.u32 %s22, 1
          %s274 = scalar_lea.sflag [#allocation6], %s273
          %s275 = sand.u32 %s74, 1
          %s276 = smul.addr %s275, 4
          %s277 = scalar_lea.vmem [#allocation5], %s276
          %279 = vsyncadd %s274, 0
          %s280 = sadd.s32 %s30, %s29
          %s281 = smul.addr %s280, 4
          %s282 = scalar_lea.hbm %s1, %s281
          %s284 = sshll.u32 %s282, 4
          %s285 = int_to_ptr.hbm [resolvable:$true] %s284
          %s286 = sshll.u32 %s277, 4
          %s287 = int_to_ptr.vmem [resolvable:$true] %s286
          %289 = dma.hbm_to_vmem [thread:$0]  %s285, 64, %s287, %s274
        $region32: #{tpu_custom_call.1} parent=23 // pred_fallthru
          _
        // Predicated region
        $region33: #{tpu_custom_call.1} parent=23 // pred_check
          %p290 = pneg %p112
        $region34: #{tpu_custom_call.1} parent=23 // pred_check_branch
          %292 = sbr.rel (%p290) target = $region36
        $region35: #{tpu_custom_call.1} parent=23 // pred_region
          %s293 = sand.u32 %s22, 1
          %s294 = scalar_lea.sflag [#allocation6], %s293
          %s295 = sand.u32 %s102, 1
          %s296 = smul.addr %s295, 4
          %s297 = scalar_lea.vmem [#allocation7], %s296
          %299 = vsyncadd %s294, 0
          %s300 = sadd.s32 %s30, %s29
          %s301 = smul.addr %s300, 4
          %s302 = scalar_lea.hbm %s2, %s301
          %s304 = sshll.u32 %s302, 4
          %s305 = int_to_ptr.hbm [resolvable:$true] %s304
          %s306 = sshll.u32 %s297, 4
          %s307 = int_to_ptr.vmem [resolvable:$true] %s306
          %309 = dma.hbm_to_vmem [thread:$0]  %s305, 64, %s307, %s294
        $region36: #{tpu_custom_call.1} parent=23 // pred_fallthru
          _
        // Predicated region
        $region37: #{tpu_custom_call.1} parent=23 // pred_check
          %p310 = pneg %p138
        $region38: #{tpu_custom_call.1} parent=23 // pred_check_branch
          %312 = sbr.rel (%p310) target = $region40
        $region39: #{tpu_custom_call.1} parent=23 // pred_region
          %p313 = scmp.lt.s32.totalorder %s29, 1
          %s314 = scalar_select %p313, %s29, 1
          %s315 = scalar_lea.vmem %s3, %s314
        $region40: #{tpu_custom_call.1} parent=23 // pred_fallthru
          _
      $region24: #{tpu_custom_call.1} parent=5 // pred_fallthru
        _
      %p316 = scmp.le.s32.totalorder 1, %s22
      %p317 = scmp.lt.s32.totalorder %s22, 3
      %p318 = pnand %p316, %p317
      %p319 = pneg %p318
      // Predicated region
      $region41: #{tpu_custom_call.1} parent=5 // pred_check
        _
      $region42: #{tpu_custom_call.1} parent=5 // pred_check_branch
        %321 = sbr.rel (%p318) target = $region44
      $region43: #{tpu_custom_call.1} parent=5 // pred_region
        %s322 = ssub.s32 %s22, 1
        %s323 = sand.u32 %s49, 1
        %s324 = scalar_lea.sflag [#allocation3], %s323
        %s325 = sand.u32 %s49, 1
        %s326 = smul.addr %s325, 8
        %s327 = scalar_lea.vmem [#allocation2], %s326
        // Predicated region
        $region45: #{tpu_custom_call.1} parent=43 // pred_check
          %p328 = pneg %p62
        $region46: #{tpu_custom_call.1} parent=43 // pred_check_branch
          %330 = sbr.rel (%p328) target = $region48
        $region47: #{tpu_custom_call.1} parent=43 // pred_region
          %332 = dma.done %s324, 128
        $region48: #{tpu_custom_call.1} parent=43 // pred_fallthru
          _
        %s333 = sand.u32 %s27, 1
        %s334 = scalar_lea.sflag [#allocation6], %s333
        %s335 = sand.u32 %s77, 1
        %s336 = smul.addr %s335, 4
        %s337 = scalar_lea.vmem [#allocation5], %s336
        // Predicated region
        $region49: #{tpu_custom_call.1} parent=43 // pred_check
          %p338 = pneg %p90
        $region50: #{tpu_custom_call.1} parent=43 // pred_check_branch
          %340 = sbr.rel (%p338) target = $region52
        $region51: #{tpu_custom_call.1} parent=43 // pred_region
          %342 = dma.done %s334, 64
        $region52: #{tpu_custom_call.1} parent=43 // pred_fallthru
          _
        %s343 = sand.u32 %s27, 1
        %s344 = scalar_lea.sflag [#allocation6], %s343
        %s345 = sand.u32 %s105, 1
        %s346 = smul.addr %s345, 4
        %s347 = scalar_lea.vmem [#allocation7], %s346
        // Predicated region
        $region53: #{tpu_custom_call.1} parent=43 // pred_check
          %p348 = pneg %p118
        $region54: #{tpu_custom_call.1} parent=43 // pred_check_branch
          %350 = sbr.rel (%p348) target = $region56
        $region55: #{tpu_custom_call.1} parent=43 // pred_region
          %352 = dma.done %s344, 64
        $region56: #{tpu_custom_call.1} parent=43 // pred_fallthru
          _
        // Predicated region
        $region57: #{tpu_custom_call.1} parent=43 // pred_check
          %p353 = pneg %p165
        $region58: #{tpu_custom_call.1} parent=43 // pred_check_branch
          %355 = sbr.rel (%p353) target = $region60
        $region59: #{tpu_custom_call.1} parent=43 // pred_region
          %357 = dma.done [#allocation9], 512
        $region60: #{tpu_custom_call.1} parent=43 // pred_fallthru
          _
        %s358 = sand.u32 %s49, 1
        %s359 = scalar_lea.sflag [#allocation3], %s358
        %s360 = sand.u32 %s49, 1
        %s361 = smul.addr %s360, 8
        %s362 = scalar_lea.vmem [#allocation2], %s361
        %p363 = pneg %p62
        %p364 = pneg %p59
        %s365 = sand.u32 %s27, 1
        %s366 = scalar_lea.sflag [#allocation6], %s365
        %s367 = sand.u32 %s77, 1
        %s368 = smul.addr %s367, 4
        %s369 = scalar_lea.vmem [#allocation5], %s368
        %p370 = pneg %p90
        %p371 = pneg %p87
        %s372 = sand.u32 %s27, 1
        %s373 = scalar_lea.sflag [#allocation6], %s372
        %s374 = sand.u32 %s105, 1
        %s375 = smul.addr %s374, 4
        %s376 = scalar_lea.vmem [#allocation7], %s375
        %p377 = pneg %p118
        %p378 = pneg %p115
        %p379 = scmp.lt.s32.totalorder %s31, 1
        %s380 = scalar_select %p379, %s31, 1
        %s381 = scalar_lea.vmem %s3, %s380
        %p382 = pneg %p144
        %p383 = pneg %p141
        %p384 = pneg %p165
        %p385 = pneg %p162
        %p386 = pneg %p186
        %p387 = pneg %p183
        %p388 = pneg %p214
        %p389 = pneg %p211
        %s390 = sand.u32 %s201, 1
        %s391 = scalar_lea.sflag [#allocation4], %s390
        %s392 = sand.u32 %s201, 1
        %s393 = smul.addr %s392, 8
        %s394 = scalar_lea.vmem [#allocation10], %s393
        %p395 = scmp.lt.s32.totalorder %s31, 1
        %s396 = scalar_select %p395, %s31, 1
        %s397 = scalar_lea.vmem %s3, %s396
        %v398 = vld [vmem:[%s397] sm:$0x1]
        %v399 = vld [vmem:[%s347] sm:$0xf]
        %v400 = vunpack.c.l.bf16 %v399
        %v402 = vperm.slane %v398, 0
        %v404 = vmul.f32 %v400, %v402
        %vm405 = vcmask 261120
        %v406 = vsel %vm405, %v404, 0.0
        %407 = vadd.xlane.f32.xlu0 %v406
        %v408 = vpop.xlane.xlu0 %407
        %409 = vrot.lane.b32.xlu0 %v402, 32
        %v410 = vpop.permute.xlu0 %409
        %v412 = vmul.f32 %v400, %v410
        %414 = vrot.lane.b32.xlu0 %v412, 96
        %v415 = vpop.permute.xlu0 %414
        %v417 = vsel %vm405, %v415, 0.0
        %418 = vadd.xlane.f32.xlu0 %v417
        %v419 = vpop.xlane.xlu0 %418
        %420 = vrot.lane.b32.xlu0 %v402, 64
        %v421 = vpop.permute.xlu0 %420
        %v423 = vmul.f32 %v400, %v421
        %425 = vrot.lane.b32.xlu0 %v423, 64
        %v426 = vpop.permute.xlu0 %425
        %v428 = vsel %vm405, %v426, 0.0
        %429 = vadd.xlane.f32.xlu0 %v428
        %v430 = vpop.xlane.xlu0 %429
        %431 = vrot.lane.b32.xlu0 %v402, 96
        %v432 = vpop.permute.xlu0 %431
        %v434 = vmul.f32 %v400, %v432
        %436 = vrot.lane.b32.xlu0 %v434, 32
        %v437 = vpop.permute.xlu0 %436
        %v439 = vsel %vm405, %v437, 0.0
        %440 = vadd.xlane.f32.xlu0 %v439
        %v441 = vpop.xlane.xlu0 %440
        %vm442 = vcmask 7168
        %v443 = vsel %vm442, %v408, %v419
        %vm444 = vcmask 15360
        %v445 = vsel %vm444, %v443, %v430
        %vm446 = vcmask 23552
        %v447 = vsel %vm446, %v445, %v441
        %v448 = vmul.f32 %v447, 0.03125
        %vm449 = vcmask 31744
        %v450 = vsel %vm449, %v448, -inf
        %451 = vmax.xlane.f32.xlu0 %v450
        %v452 = vpop.xlane.xlu0 %451
        %v453 = vsub.f32 %v448, %v452
        %v454 = vmul.f32 %v453, 1.442695
        %v455 = vpow.pop %v454
        %v456 = vsel %vm449, %v455, 0.0
        %457 = vadd.xlane.f32.xlu0 %v456
        %v458 = vpop.xlane.xlu0 %457
        %v459 = vrcp.pop %v458
        %v460 = vmul.f32 %v455, %v459
        %v461 = vld [vmem:[%s337] sm:$0xf]
        %v462 = vunpack.c.l.bf16 %v461
        %464 = vset.pattern.permute.xlu0 0
        %465 = vperm.xlu0 %464, %v460
        %v466 = vpop.permute.xlu0 %465
        %v468 = vmul.f32 %v466, %v462
        %469 = vset.pattern.permute.xlu0 1
        %470 = vperm.xlu0 %469, %v460
        %v471 = vpop.permute.xlu0 %470
        %v473 = vmul.f32 %v471, %v462
        %475 = vrot.lane.b32.xlu0 %v473, 96
        %v476 = vpop.permute.xlu0 %475
        %v478 = vadd.f32 %v468, %v476
        %479 = vset.pattern.permute.xlu0 2
        %480 = vperm.xlu0 %479, %v460
        %v481 = vpop.permute.xlu0 %480
        %v483 = vmul.f32 %v481, %v462
        %485 = vrot.lane.b32.xlu0 %v483, 64
        %v486 = vpop.permute.xlu0 %485
        %v488 = vadd.f32 %v478, %v486
        %489 = vset.pattern.permute.xlu0 3
        %490 = vperm.xlu0 %489, %v460
        %v491 = vpop.permute.xlu0 %490
        %v493 = vmul.f32 %v491, %v462
        %495 = vrot.lane.b32.xlu0 %v493, 32
        %v496 = vpop.permute.xlu0 %495
        %v498 = vadd.f32 %v488, %v496
        %v499 = vld [vmem:[%s327] sm:$0xff]
        %v500 = vmul.f32 %v498, 0.25
        %v501 = vadd.f32 %v499, %v500
        %v502 = vld [vmem:[#allocation8] sm:$0xff]
        %v503 = vld [vmem:[#allocation8 + $0x8] sm:$0xff]
        %v504 = vld [vmem:[#allocation8 + $0x10] sm:$0xff]
        %v505 = vld [vmem:[#allocation8 + $0x18] sm:$0xff]
        %v506 = vld [vmem:[%s5] sm:$0x1]
        %v508 = vperm.slane %v506, 0
        %v511 = vsel %vm405, %v501, 0
        %513 = vmatpush.msra.mxu0 0.0
        %514 = vmatpush.msra.mxu0 0.0
        %515 = vmatpush.msra.mxu0 0.0
        %516 = vmatpush.msra.mxu0 0.0
        %517 = vmatpush.msra.mxu0 0.0
        %518 = vmatpush.msra.mxu0 0.0
        %519 = vmatpush.msra.mxu0 0.0
        %520 = vmatpush.msra.mxu0 0.0
        %521 = vmatpush.msra.mxu0 0.0
        %522 = vmatpush.msra.mxu0 0.0
        %523 = vmatpush.msra.mxu0 0.0
        %524 = vmatpush.msra.mxu0 0.0
        %525 = vmatpush.msra.mxu0 %v505
        %526 = vmatpush.msra.mxu0 %v504
        %527 = vmatpush.msra.mxu0 %v503
        %528 = vmatpush.msra.mxu0 %v502
        %529 = vmatmul.f32.gmra.mxu0 %v511
        %v530 = vpop.f32.mrf.mxu0
        %v531 = vadd.f32 %v508, %v530
        %532 = vdwg.mxu0
        %v533 = vmax.f32 %v531, 0.0
        %534 = vst.msk [vmem:[%s394] sm:$0xff] %vm405, %v533
        %s535 = sand.u32 %s201, 1
        %s536 = scalar_lea.sflag [#allocation4], %s535
        %s537 = sand.u32 %s201, 1
        %s538 = smul.addr %s537, 8
        %s539 = scalar_lea.vmem [#allocation10], %s538
        // Predicated region
        $region61: #{tpu_custom_call.1} parent=43 // pred_check
          %p540 = pneg %p211
        $region62: #{tpu_custom_call.1} parent=43 // pred_check_branch
          %542 = sbr.rel (%p540) target = $region64
        $region63: #{tpu_custom_call.1} parent=43 // pred_region
          %544 = vsyncadd %s536, 0
          %s545 = sadd.s32 %s32, %s31
          %s546 = smul.addr %s545, 8
          %s547 = scalar_lea.hbm %s6, %s546
          %s549 = sshll.u32 %s539, 4
          %s550 = int_to_ptr.vmem [resolvable:$true] %s549
          %s551 = sshll.u32 %s547, 4
          %s552 = int_to_ptr.hbm [resolvable:$true] %s551
          %554 = dma.vmem_to_hbm [thread:$0]  %s550, 128, %s552, %s536
        $region64: #{tpu_custom_call.1} parent=43 // pred_fallthru
          _
      $region44: #{tpu_custom_call.1} parent=5 // pred_fallthru
        _
      %p555 = scmp.le.s32.totalorder 2, %s22
      // Predicated region
      $region65: #{tpu_custom_call.1} parent=5 // pred_check
        %p556 = pneg %p555
      $region66: #{tpu_custom_call.1} parent=5 // pred_check_branch
        %558 = sbr.rel (%p556) target = $region68
      $region67: #{tpu_custom_call.1} parent=5 // pred_region
        %s559 = ssub.s32 %s22, 2
        // Predicated region
        $region69: #{tpu_custom_call.1} parent=67 // pred_check
          %p560 = pneg %p217
        $region70: #{tpu_custom_call.1} parent=67 // pred_check_branch
          %562 = sbr.rel (%p560) target = $region72
        $region71: #{tpu_custom_call.1} parent=67 // pred_region
          %s563 = sand.u32 %s202, 1
          %s564 = scalar_lea.sflag [#allocation4], %s563
          %s565 = sand.u32 %s202, 1
          %s566 = smul.addr %s565, 8
          %s567 = scalar_lea.vmem [#allocation10], %s566
          %569 = dma.done %s564, 128
        $region72: #{tpu_custom_call.1} parent=67 // pred_fallthru
          _
      $region68: #{tpu_custom_call.1} parent=5 // pred_fallthru
        _
    $region6: #{tpu_custom_call.1} parent=1 // loop_footer
      %s26 = sadd.s32 1, %s22
    $region7: #{tpu_custom_call.1} parent=1 // loop_footer_branch
      %21 = sbr.rel target = $region3
    $region8: #{tpu_custom_call.1} parent=1 // loop_exit
      _
    %570 = vsyncpa [#allocation3], 1
    %s571 = scalar_lea.sflag [#allocation3], 1
    %572 = vsyncpa %s571, 1
    %573 = vsyncpa [#allocation6], 1
    %s574 = scalar_lea.sflag [#allocation6], 1
    %575 = vsyncpa %s574, 1
    %576 = vsyncpa [#allocation9], 1
    %577 = vsyncpa [#allocation4], 1
    %s578 = scalar_lea.sflag [#allocation4], 1
    %579 = vsyncpa %s578, 1

</llo_original>
